<compile_context>
chip_gen: v7x
topology: tpu7x:2x2x1
jax: 0.10.0
libtpu: 0.0.40
codegen_flags: <defaults>
</compile_context>

<pallas_src>
import math
import numpy as np
import jax
import jax.numpy as jnp
from jax.experimental import pallas as pl
from jax.experimental.pallas import tpu as pltpu


def _interp_matrix(in_size: int, out_size: int, scale: float,
                   align_corners: bool, dtype) -> jnp.ndarray:
    """(out_size, in_size) bilinear weight matrix with PyTorch's exact semantics."""
    i = np.arange(out_size, dtype=np.float64)
    if align_corners:
        ratio = (in_size - 1) / (out_size - 1) if out_size > 1 else 0.0
        src = i * ratio
    else:
        # PyTorch (recompute_scale_factor unset): 1/scale_factor enters directly.
        src = (i + 0.5) * (1.0 / scale) - 0.5
        src = np.maximum(src, 0.0)
    i0 = np.clip(np.floor(src).astype(np.int64), 0, in_size - 1)
    i1 = np.minimum(i0 + 1, in_size - 1)
    lam = src - i0
    W = np.zeros((out_size, in_size), dtype=np.float32)
    np.add.at(W, (np.arange(out_size), i0), 1.0 - lam)
    np.add.at(W, (np.arange(out_size), i1), lam)
    return jnp.asarray(W, dtype=dtype)


def _make_kernel(tc: int, h_in: int, h_out: int, w_out: int):
    def kernel(wh_ref, wwt_ref, x_ref, o_ref, yt_ref):
        # wh_ref : (h_out, h_in)      f32, grid-invariant (stays resident)
        # wwt_ref: (w_in, w_out)      activation dtype, grid-invariant
        # x_ref  : (tc*h_in, w_in)    channel-major rows of this channel block
        # o_ref  : (tc*h_out, w_out)  channel-major rows of this channel block
        # yt_ref : (h_in, tc*w_out)   f32 scratch (H-major intermediate)

        # Pass 1 (W axis): one flat MXU matmul, M = tc*h_in (no in-kernel reshape;
        # the wrapper already presents x flattened).
        y = jnp.dot(x_ref[...], wwt_ref[...],
                    preferred_element_type=jnp.float32)       # (tc*h_in, w_out) f32

        # Middle relayout (VMEM-local): channel-major rows -> H-major columns so
        # pass 2 can be one matmul with N = tc*w_out.
        if tc == 1:
            yt = y
        else:
            for c in range(tc):
                yt_ref[:, c * w_out:(c + 1) * w_out] = y[c * h_in:(c + 1) * h_in, :]
            yt = yt_ref[...]

        # Pass 2 (H axis): one flat MXU matmul, N = tc*w_out, f32 end-to-end.
        z = jnp.dot(wh_ref[...], yt,
                    preferred_element_type=jnp.float32)       # (h_out, tc*w_out)
        z = z.astype(o_ref.dtype)                             # single final rounding

        # Store back in channel-major (NCHW) row order; the whole output block is
        # one contiguous HBM row range, so the writeback DMA stays dense.
        for c in range(tc):
            o_ref[c * h_out:(c + 1) * h_out, :] = z[:, c * w_out:(c + 1) * w_out]

    return kernel


def _pick_channel_block(g: int, h_in: int, h_out: int, cap: int) -> int:
    """Largest divisor d of g with d <= cap such that the flat blocks
    (d*h_in, W_in) / (d*h_out, W_out) keep their second-to-last dim a multiple
    of 8 (legal TPU BlockSpec).  Falls back to g (full-array block, always legal)."""
    cap = max(1, int(cap))
    best = None
    for d in range(1, min(g, cap) + 1):
        if g % d == 0 and (d * h_in) % 8 == 0 and (d * h_out) % 8 == 0:
            best = d
    if best is None:
        # TODO(synk): add an H_out row-tiling grid axis for huge single planes
        # instead of falling back to a single full-array block.
        best = g
    return best


def interpolate(x: jnp.ndarray, scale_factor, mode: str = "bilinear",
                align_corners: bool = False) -> jnp.ndarray:
    """Pallas equivalent of Interpolate.forward for NCHW input `x`."""
    assert mode == "bilinear", "only bilinear mode implemented"
    # TODO(synk): "nearest" / "bicubic" modes not implemented (DPT uses bilinear).
    if isinstance(scale_factor, (tuple, list)):
        sh, sw = float(scale_factor[0]), float(scale_factor[1])
    else:
        sh = sw = float(scale_factor)

    N, C, H_in, W_in = x.shape
    H_out = int(math.floor(H_in * sh))
    W_out = int(math.floor(W_in * sw))
    G = N * C
    isz = np.dtype(x.dtype).itemsize

    # Pass-1 weights in activation dtype (bf16 -> bf16 MXU operands, f32 acc);
    # pass-2 weights f32 so the intermediate stays f32 until the final store.
    w1_dtype = jnp.bfloat16 if x.dtype == jnp.bfloat16 else jnp.float32
    wwt = _interp_matrix(W_in, W_out, sw, align_corners, w1_dtype).T    # (W_in, W_out)
    wh = _interp_matrix(H_in, H_out, sh, align_corners, jnp.float32)    # (H_out, H_in)

    # --- VMEM budget per chip generation (v5e/v6e: 128 MiB, v7x: 64 MiB) ------
    try:
        vmem_cap = int(getattr(pltpu.get_tpu_info(), "vmem_capacity_bytes", 64 << 20))
    except Exception:
        vmem_cap = 64 << 20                      # conservative (v7x-sized) fallback
    budget = min(vmem_cap * 3 // 8, 48 << 20)    # ~48 MiB on v5e/v6e, ~24 MiB on v7x

    # Per-channel VMEM cost: double-buffered in/out tiles + f32 intermediates.
    per_ch = (2 * H_in * W_in * isz + 2 * H_out * W_out * isz
              + 2 * H_in * W_out * 4 + H_out * W_out * 4)
    weight_bytes = 2 * (int(wh.size) * 4 + int(wwt.size) * np.dtype(w1_dtype).itemsize)
    tc_budget = max(1, (budget - weight_bytes) // max(per_ch, 1))

    # Channel block: a divisor of G (no pad / no output slice), capped so it fits
    # the budget, keeps the unrolled in-kernel loops short, and leaves >= 2 grid
    # blocks whenever possible (feeds both v7x TensorCores).
    cap = min(tc_budget, 64)
    if G >= 2:
        cap = min(cap, max(1, G // 2))
    tc = _pick_channel_block(G, H_in, H_out, cap)
    n_blocks = G // tc

    ws_bytes = per_ch * tc + weight_bytes + (1 << 20)
    vmem_limit = int(min(0.75 * vmem_cap, 96 << 20))
    vmem_limit = int(min(max(vmem_limit, ws_bytes), 0.9 * vmem_cap))
    vmem_limit = max(vmem_limit, 16 << 20)

    x2d = x.reshape(G * H_in, W_in)              # metadata-only on contiguous NCHW

    out2d = pl.pallas_call(
        _make_kernel(tc, H_in, H_out, W_out),
        out_shape=jax.ShapeDtypeStruct((G * H_out, W_out), x.dtype),
        grid_spec=pltpu.PrefetchScalarGridSpec(
            num_scalar_prefetch=0,
            grid=(n_blocks,),
            in_specs=[
                pl.BlockSpec((H_out, H_in), lambda i: (0, 0)),        # Wh   (resident)
                pl.BlockSpec((W_in, W_out), lambda i: (0, 0)),        # Ww^T (resident)
                pl.BlockSpec((tc * H_in, W_in), lambda i: (i, 0)),    # x block (contig.)
            ],
            out_specs=pl.BlockSpec((tc * H_out, W_out), lambda i: (i, 0)),
            scratch_shapes=[pltpu.VMEM((H_in, tc * W_out), jnp.float32)],
        ),
        compiler_params=pltpu.CompilerParams(
            dimension_semantics=("parallel",),
            vmem_limit_bytes=vmem_limit),
    )(wh, wwt, x2d)

    return out2d.reshape(N, C, H_out, W_out)


if __name__ == "__main__":
    key = jax.random.PRNGKey(0)
    N, C, H, W = 2, 4, 16, 16
    x = jax.random.normal(key, (N, C, H, W), dtype=jnp.float32)

    out = interpolate(x, scale_factor=2.0, mode="bilinear", align_corners=False)
    out = jax.block_until_ready(out)
    assert out.shape == (N, C, 32, 32)

    # jax.image.resize 'bilinear' uses half-pixel centers, matching PyTorch's
    # align_corners=False upsampling for integer scale factors.
    ref = jax.image.resize(x, (N, C, 32, 32), method="bilinear")
    np.testing.assert_allclose(np.asarray(out), np.asarray(ref), rtol=1e-5, atol=1e-5)

    # Channel count with no "nice" factors -> divisor-based blocking (no padding)
    # must still cover it exactly.
    x2 = jax.random.normal(jax.random.PRNGKey(1), (3, 11, 8, 8), dtype=jnp.float32)
    out2 = jax.block_until_ready(interpolate(x2, 2.0, "bilinear", False))
    ref2 = jax.image.resize(x2, (3, 11, 16, 16), method="bilinear")
    np.testing.assert_allclose(np.asarray(out2), np.asarray(ref2), rtol=1e-5, atol=1e-5)

    # bf16 path: bf16 MXU operands for pass 1, f32 opmath through pass 2,
    # single rounding at the final store.
    xb = x.astype(jnp.bfloat16)
    outb = jax.block_until_ready(interpolate(xb, 2.0, "bilinear", False))
    assert outb.shape == (N, C, 32, 32)
    np.testing.assert_allclose(np.asarray(outb).astype(np.float32), np.asarray(ref),
                               rtol=0.05, atol=0.05)

    print("KERNEL_OK")
</pallas_src>

<mosaic_0001>
module attributes {stable_mosaic.version = 11 : i64} {
  func.func @kernel(%arg0: i32, %arg1: memref<32x16xf32, #tpu.memory_space<vmem>>, %arg2: memref<16x32xf32, #tpu.memory_space<vmem>>, %arg3: memref<64x16xf32, #tpu.memory_space<vmem>>, %arg4: memref<128x32xf32, #tpu.memory_space<vmem>>, %arg5: memref<16x128xf32, #tpu.memory_space<vmem>>) attributes {dimension_semantics = [#tpu.dimension_semantics<parallel>], iteration_bounds = array<i64: 2>, scalar_prefetch = 0 : i64, scratch_operands = 1 : i64, tpu.core_type = #tpu.core_type<tc>, window_params = [{pipeline_mode = #tpu.pipeline_mode<synchronous>, transform_indices = @transform_0, window_bounds = array<i64: 32, 16>}, {pipeline_mode = #tpu.pipeline_mode<synchronous>, transform_indices = @transform_1, window_bounds = array<i64: 16, 32>}, {transform_indices = @transform_2, window_bounds = array<i64: 64, 16>}, {transform_indices = @transform_3, window_bounds = array<i64: 128, 32>}]} {
    %c0 = arith.constant 0 : index
    %c0_0 = arith.constant 0 : index
    %0 = vector.load %arg3[%c0, %c0_0] : memref<64x16xf32, #tpu.memory_space<vmem>>, vector<64x16xf32>
    %c0_1 = arith.constant 0 : index
    %c0_2 = arith.constant 0 : index
    %1 = vector.load %arg2[%c0_1, %c0_2] : memref<16x32xf32, #tpu.memory_space<vmem>>, vector<16x32xf32>
    %cst = arith.constant dense<0.000000e+00> : vector<64x32xf32>
    %2 = tpu.matmul %0, %1, %cst {dimension_numbers = #tpu.dot_dimension_numbers<[1], [0], [0], [1], [0, 0, 1, 1], [], []>} : vector<64x16xf32>, vector<16x32xf32>, vector<64x32xf32> -> vector<64x32xf32>
    %3 = vector.extract_strided_slice %2 {offsets = [0, 0], sizes = [16, 32], strides = [1, 1]} : vector<64x32xf32> to vector<16x32xf32>
    %c0_3 = arith.constant 0 : index
    %c0_4 = arith.constant 0 : index
    %4 = vector.load %arg5[%c0_3, %c0_4] : memref<16x128xf32, #tpu.memory_space<vmem>>, vector<16x32xf32>
    tpu.vector_store %arg5[%c0_3, %c0_4], %3 {strides = array<i32>} : memref<16x128xf32, #tpu.memory_space<vmem>>, vector<16x32xf32>,
    %5 = vector.extract_strided_slice %2 {offsets = [16, 0], sizes = [16, 32], strides = [1, 1]} : vector<64x32xf32> to vector<16x32xf32>
    %c0_5 = arith.constant 0 : index
    %c32 = arith.constant 32 : index
    %6 = vector.load %arg5[%c0_5, %c32] : memref<16x128xf32, #tpu.memory_space<vmem>>, vector<16x32xf32>
    tpu.vector_store %arg5[%c0_5, %c32], %5 {strides = array<i32>} : memref<16x128xf32, #tpu.memory_space<vmem>>, vector<16x32xf32>,
    %7 = vector.extract_strided_slice %2 {offsets = [32, 0], sizes = [16, 32], strides = [1, 1]} : vector<64x32xf32> to vector<16x32xf32>
    %c0_6 = arith.constant 0 : index
    %c64 = arith.constant 64 : index
    %8 = vector.load %arg5[%c0_6, %c64] : memref<16x128xf32, #tpu.memory_space<vmem>>, vector<16x32xf32>
    tpu.vector_store %arg5[%c0_6, %c64], %7 {strides = array<i32>} : memref<16x128xf32, #tpu.memory_space<vmem>>, vector<16x32xf32>,
    %9 = vector.extract_strided_slice %2 {offsets = [48, 0], sizes = [16, 32], strides = [1, 1]} : vector<64x32xf32> to vector<16x32xf32>
    %c0_7 = arith.constant 0 : index
    %c96 = arith.constant 96 : index
    %10 = vector.load %arg5[%c0_7, %c96] : memref<16x128xf32, #tpu.memory_space<vmem>>, vector<16x32xf32>
    tpu.vector_store %arg5[%c0_7, %c96], %9 {strides = array<i32>} : memref<16x128xf32, #tpu.memory_space<vmem>>, vector<16x32xf32>,
    %c0_8 = arith.constant 0 : index
    %c0_9 = arith.constant 0 : index
    %11 = vector.load %arg5[%c0_8, %c0_9] : memref<16x128xf32, #tpu.memory_space<vmem>>, vector<16x128xf32>
    %c0_10 = arith.constant 0 : index
    %c0_11 = arith.constant 0 : index
    %12 = vector.load %arg1[%c0_10, %c0_11] : memref<32x16xf32, #tpu.memory_space<vmem>>, vector<32x16xf32>
    %cst_12 = arith.constant dense<0.000000e+00> : vector<32x128xf32>
    %13 = tpu.matmul %12, %11, %cst_12 {dimension_numbers = #tpu.dot_dimension_numbers<[1], [0], [0], [1], [0, 0, 1, 1], [], []>} : vector<32x16xf32>, vector<16x128xf32>, vector<32x128xf32> -> vector<32x128xf32>
    %14 = vector.extract_strided_slice %13 {offsets = [0, 0], sizes = [32, 32], strides = [1, 1]} : vector<32x128xf32> to vector<32x32xf32>
    %c0_13 = arith.constant 0 : index
    %c0_14 = arith.constant 0 : index
    %15 = vector.load %arg4[%c0_13, %c0_14] : memref<128x32xf32, #tpu.memory_space<vmem>>, vector<32x32xf32>
    tpu.vector_store %arg4[%c0_13, %c0_14], %14 {strides = array<i32>} : memref<128x32xf32, #tpu.memory_space<vmem>>, vector<32x32xf32>,
    %16 = vector.extract_strided_slice %13 {offsets = [0, 32], sizes = [32, 32], strides = [1, 1]} : vector<32x128xf32> to vector<32x32xf32>
    %c32_15 = arith.constant 32 : index
    %c0_16 = arith.constant 0 : index
    %17 = vector.load %arg4[%c32_15, %c0_16] : memref<128x32xf32, #tpu.memory_space<vmem>>, vector<32x32xf32>
    tpu.vector_store %arg4[%c32_15, %c0_16], %16 {strides = array<i32>} : memref<128x32xf32, #tpu.memory_space<vmem>>, vector<32x32xf32>,
    %18 = vector.extract_strided_slice %13 {offsets = [0, 64], sizes = [32, 32], strides = [1, 1]} : vector<32x128xf32> to vector<32x32xf32>
    %c64_17 = arith.constant 64 : index
    %c0_18 = arith.constant 0 : index
    %19 = vector.load %arg4[%c64_17, %c0_18] : memref<128x32xf32, #tpu.memory_space<vmem>>, vector<32x32xf32>
    tpu.vector_store %arg4[%c64_17, %c0_18], %18 {strides = array<i32>} : memref<128x32xf32, #tpu.memory_space<vmem>>, vector<32x32xf32>,
    %20 = vector.extract_strided_slice %13 {offsets = [0, 96], sizes = [32, 32], strides = [1, 1]} : vector<32x128xf32> to vector<32x32xf32>
    %c96_19 = arith.constant 96 : index
    %c0_20 = arith.constant 0 : index
    %21 = vector.load %arg4[%c96_19, %c0_20] : memref<128x32xf32, #tpu.memory_space<vmem>>, vector<32x32xf32>
    tpu.vector_store %arg4[%c96_19, %c0_20], %20 {strides = array<i32>} : memref<128x32xf32, #tpu.memory_space<vmem>>, vector<32x32xf32>,
    return
  }
  func.func @transform_0(%arg0: i32) -> (i32, i32) {
    %c0_i32 = arith.constant 0 : i32
    %c0_i32_0 = arith.constant 0 : i32
    %c0_i32_1 = arith.constant 0 : i32
    return %c0_i32, %c0_i32_0 : i32, i32
  }
  func.func @transform_1(%arg0: i32) -> (i32, i32) {
    %c0_i32 = arith.constant 0 : i32
    %c0_i32_0 = arith.constant 0 : i32
    %c0_i32_1 = arith.constant 0 : i32
    return %c0_i32, %c0_i32_0 : i32, i32
  }
  func.func @transform_2(%arg0: i32) -> (i32, i32) {
    %c0_i32 = arith.constant 0 : i32
    %c0_i32_0 = arith.constant 0 : i32
    return %arg0, %c0_i32 : i32, i32
  }
  func.func @transform_3(%arg0: i32) -> (i32, i32) {
    %c0_i32 = arith.constant 0 : i32
    %c0_i32_0 = arith.constant 0 : i32
    return %arg0, %c0_i32 : i32, i32
  }
}

</mosaic_0001>

<llo_original>
// kernel: tpu_custom_call.1
$region0: #{tpu_custom_call.1}
  #allocation0 [shape = 'u32[]', space=smem, size = 0x4, offset = 0x4, fixed_abs, tag = 'smem constant byte address 0x4 - core index']
  #allocation1 [shape = 'u32[144,128]{1,0:T(1,128)}', space=vmem, size = 0x12000, scoped, tag = 'internal scratch']
  #allocation2 [shape = 'f32[16,128]{1,0:T(8,128)}', space=vmem, size = 0x2000, scoped, tag = 'scratch operand']
  %s0 = inlined_call_operand.vmem [shape: f32[32,16], index: 0, kind: input, shape index: {}]
  %s1 = inlined_call_operand.vmem [shape: f32[16,32], index: 1, kind: input, shape index: {}]
  %s2 = inlined_call_operand.vmem [shape: f32[128,16], index: 2, kind: input, shape index: {}]
  %s3 = inlined_call_operand.vmem [shape: f32[256,32], index: 3, kind: output, shape index: {}]
  %s4 = sld [smem:[#allocation0]]
  $region45: #{tpu_custom_call.1} parent=0
    _
  %s6 = ssub.s32 1, %s4
  %s7 = scalar_select 0, %s6, %s4
  loop: start=0, step=1, limit=4
  $region2: #{tpu_custom_call.1} parent=0 // loop_pre_header
    _
  $region3: #{tpu_custom_call.1} parent=0 // loop_header
    %s9 = sphi 0, %s13
    %p10 = scmp.ge.s32.totalorder %s9, 4
    %s17 = sphi 0, %s17
    %s19 = sphi 0, %s17
    %s20 = sphi 0, %s19
    %s34 = sphi 0, %s20
    %s38 = sphi 0, %s38
    %s40 = sphi 0, %s38
    %s41 = sphi 0, %s40
    %s55 = sphi 0, %s41
    %s61 = sphi 0, %s63
    %s64 = sphi 0, %s61
    %s65 = sphi 0, %s64
    %s81 = sphi 0, %s65
    %s87 = sphi 0, %s89
    %s90 = sphi 0, %s87
    %s91 = sphi 0, %s90
    %s107 = sphi 0, %s91
  $region4: #{tpu_custom_call.1} parent=0 // loop_header_branch
    %12 = sbr.rel (%p10) target = $region8
  $region5: #{tpu_custom_call.1} parent=0 // loop_body
    %s14 = ssub.s32 %s9, 1
    %s15 = ssub.s32 %s9, 2
    %s16 = sadd.s32 %s9, 1
    %s18 = sadd.s32 %s17, 1
    %p21 = scmp.eq.s32.totalorder %s9, 1
    %p22 = scmp.ne.s32.totalorder %s17, %s19
    %p23 = scmp.eq.s32.totalorder %s9, 0
    %p24 = por %p22, %p23
    %p25 = scmp.ne.s32.totalorder %s17, %s19
    %p26 = scmp.eq.s32.totalorder %s14, 1
    %p27 = por %p25, %p26
    %p28 = scmp.ne.s32.totalorder %s19, %s20
    %p29 = scmp.eq.s32.totalorder %s14, 0
    %p30 = por %p28, %p29
    %p31 = scmp.ne.s32.totalorder %s19, %s20
    %p32 = scmp.eq.s32.totalorder %s15, 1
    %p33 = por %p31, %p32
    %p35 = scmp.ne.s32.totalorder %s20, %s34
    %p36 = scmp.eq.s32.totalorder %s15, 0
    %p37 = por %p35, %p36
    %s39 = sadd.s32 %s38, 1
    %p42 = scmp.eq.s32.totalorder %s9, 1
    %p43 = scmp.ne.s32.totalorder %s38, %s40
    %p44 = scmp.eq.s32.totalorder %s9, 0
    %p45 = por %p43, %p44
    %p46 = scmp.ne.s32.totalorder %s38, %s40
    %p47 = scmp.eq.s32.totalorder %s14, 1
    %p48 = por %p46, %p47
    %p49 = scmp.ne.s32.totalorder %s40, %s41
    %p50 = scmp.eq.s32.totalorder %s14, 0
    %p51 = por %p49, %p50
    %p52 = scmp.ne.s32.totalorder %s40, %s41
    %p53 = scmp.eq.s32.totalorder %s15, 1
    %p54 = por %p52, %p53
    %p56 = scmp.ne.s32.totalorder %s41, %s55
    %p57 = scmp.eq.s32.totalorder %s15, 0
    %p58 = por %p56, %p57
    %s59 = ssub.s32 %s9, %s16
    %p60 = scmp.eq.s32.totalorder %s59, 0
    %s62 = sadd.s32 %s61, 1
    %s63 = scalar_select %p60, %s61, %s62
    %p66 = pneg %p60
    %p67 = scmp.eq.s32.totalorder %s9, 1
    %p68 = por %p66, %p67
    %p69 = scmp.ne.s32.totalorder %s61, %s64
    %p70 = scmp.eq.s32.totalorder %s9, 0
    %p71 = por %p69, %p70
    %p72 = scmp.ne.s32.totalorder %s61, %s64
    %p73 = scmp.eq.s32.totalorder %s14, 1
    %p74 = por %p72, %p73
    %p75 = scmp.ne.s32.totalorder %s64, %s65
    %p76 = scmp.eq.s32.totalorder %s14, 0
    %p77 = por %p75, %p76
    %p78 = scmp.ne.s32.totalorder %s64, %s65
    %p79 = scmp.eq.s32.totalorder %s15, 1
    %p80 = por %p78, %p79
    %p82 = scmp.ne.s32.totalorder %s65, %s81
    %p83 = scmp.eq.s32.totalorder %s15, 0
    %p84 = por %p82, %p83
    %s85 = ssub.s32 %s9, %s16
    %p86 = scmp.eq.s32.totalorder %s85, 0
    %s88 = sadd.s32 %s87, 1
    %s89 = scalar_select %p86, %s87, %s88
    %p92 = pneg %p86
    %p93 = scmp.eq.s32.totalorder %s9, 1
    %p94 = por %p92, %p93
    %p95 = scmp.ne.s32.totalorder %s87, %s90
    %p96 = scmp.eq.s32.totalorder %s9, 0
    %p97 = por %p95, %p96
    %p98 = scmp.ne.s32.totalorder %s87, %s90
    %p99 = scmp.eq.s32.totalorder %s14, 1
    %p100 = por %p98, %p99
    %p101 = scmp.ne.s32.totalorder %s90, %s91
    %p102 = scmp.eq.s32.totalorder %s14, 0
    %p103 = por %p101, %p102
    %p104 = scmp.ne.s32.totalorder %s90, %s91
    %p105 = scmp.eq.s32.totalorder %s15, 1
    %p106 = por %p104, %p105
    %p108 = scmp.ne.s32.totalorder %s91, %s107
    %p109 = scmp.eq.s32.totalorder %s15, 0
    %p110 = por %p108, %p109
    %p111 = scmp.le.s32.totalorder 1, %s9
    %p112 = scmp.lt.s32.totalorder %s9, 3
    %p113 = pnand %p111, %p112
    %p114 = pneg %p113
    // Predicated region
    $region9: #{tpu_custom_call.1} parent=5 // pred_check
      _
    $region10: #{tpu_custom_call.1} parent=5 // pred_check_branch
      %116 = sbr.rel (%p113) target = $region12
    $region11: #{tpu_custom_call.1} parent=5 // pred_region
      %s117 = ssub.s32 %s9, 1
      // Predicated region
      $region13: #{tpu_custom_call.1} parent=11 // pred_check
        %p118 = pneg %p30
      $region14: #{tpu_custom_call.1} parent=11 // pred_check_branch
        %120 = sbr.rel (%p118) target = $region16
      $region15: #{tpu_custom_call.1} parent=11 // pred_region
        _
      $region16: #{tpu_custom_call.1} parent=11 // pred_fallthru
        _
      // Predicated region
      $region17: #{tpu_custom_call.1} parent=11 // pred_check
        %p121 = pneg %p51
      $region18: #{tpu_custom_call.1} parent=11 // pred_check_branch
        %123 = sbr.rel (%p121) target = $region20
      $region19: #{tpu_custom_call.1} parent=11 // pred_region
        _
      $region20: #{tpu_custom_call.1} parent=11 // pred_fallthru
        _
    $region12: #{tpu_custom_call.1} parent=5 // pred_fallthru
      _
    %p124 = scmp.lt.s32.totalorder %s9, 2
    // Predicated region
    $region21: #{tpu_custom_call.1} parent=5 // pred_check
      %p125 = pneg %p124
    $region22: #{tpu_custom_call.1} parent=5 // pred_check_branch
      %127 = sbr.rel (%p125) target = $region24
    $region23: #{tpu_custom_call.1} parent=5 // pred_region
      // Predicated region
      $region25: #{tpu_custom_call.1} parent=23 // pred_check
        %p128 = pneg %p71
      $region26: #{tpu_custom_call.1} parent=23 // pred_check_branch
        %130 = sbr.rel (%p128) target = $region28
      $region27: #{tpu_custom_call.1} parent=23 // pred_region
        %s131 = smul.u32 8, %s9
        %p132 = scmp.lt.s32.totalorder %s131, 15
        %s133 = scalar_select %p132, %s131, 15
        %s134 = smul.addr %s133, 8
        %s135 = scalar_lea.vmem %s2, %s134
        %s136 = smul.u32 8, %s9
      $region28: #{tpu_custom_call.1} parent=23 // pred_fallthru
        _
    $region24: #{tpu_custom_call.1} parent=5 // pred_fallthru
      _
    %p137 = scmp.le.s32.totalorder 1, %s9
    %p138 = scmp.lt.s32.totalorder %s9, 3
    %p139 = pnand %p137, %p138
    %p140 = pneg %p139
    // Predicated region
    $region29: #{tpu_custom_call.1} parent=5 // pred_check
      _
    $region30: #{tpu_custom_call.1} parent=5 // pred_check_branch
      %142 = sbr.rel (%p139) target = $region32
    $region31: #{tpu_custom_call.1} parent=5 // pred_region
      %s143 = ssub.s32 %s9, 1
      %p144 = pneg %p30
      %p145 = pneg %p27
      %p146 = pneg %p51
      %p147 = pneg %p48
      %s148 = smul.u32 8, %s14
      %p149 = scmp.lt.s32.totalorder %s148, 15
      %s150 = scalar_select %p149, %s148, 15
      %s151 = smul.addr %s150, 8
      %s152 = scalar_lea.vmem %s2, %s151
      %p153 = pneg %p77
      %p154 = pneg %p74
      %p155 = pneg %p103
      %p156 = pneg %p100
      %s157 = smul.u32 16, %s14
      %p158 = scmp.lt.s32.totalorder %s157, 31
      %s159 = scalar_select %p158, %s157, 31
      %s160 = smul.addr %s159, 8
      %s161 = scalar_lea.vmem %s3, %s160
      %s162 = smul.u32 8, %s14
      %p163 = scmp.lt.s32.totalorder %s162, 15
      %s164 = scalar_select %p163, %s162, 15
      %s165 = smul.addr %s164, 8
      %s166 = scalar_lea.vmem %s2, %s165
      %s167 = smul.u32 8, %s14
      %s168 = smul.u32 16, %s14
      %p169 = scmp.lt.s32.totalorder %s168, 31
      %s170 = scalar_select %p169, %s168, 31
      %s171 = smul.addr %s170, 8
      %s172 = scalar_lea.vmem %s3, %s171
      %s173 = smul.u32 16, %s14
      %v174 = vld [vmem:[%s166] sm:$0xff]
      %v175 = vld [vmem:[%s166 + $0x8] sm:$0xff]
      %v176 = vld [vmem:[%s166 + $0x10] sm:$0xff]
      %v177 = vld [vmem:[%s166 + $0x18] sm:$0xff]
      %v178 = vld [vmem:[%s166 + $0x20] sm:$0xff]
      %v179 = vld [vmem:[%s166 + $0x28] sm:$0xff]
      %v180 = vld [vmem:[%s166 + $0x30] sm:$0xff]
      %v181 = vld [vmem:[%s166 + $0x38] sm:$0xff]
      %v182 = vld [vmem:[%s1] sm:$0xff]
      %v183 = vld [vmem:[%s1 + $0x8] sm:$0xff]
      %vm184 = vcmask 130048
      %v186 = vsel %vm184, %v174, 0
      %v189 = vsel %vm184, %v175, 0
      %v192 = vsel %vm184, %v176, 0
      %v195 = vsel %vm184, %v177, 0
      %v198 = vsel %vm184, %v178, 0
      %v201 = vsel %vm184, %v179, 0
      %v204 = vsel %vm184, %v180, 0
      %v207 = vsel %vm184, %v181, 0
      %209 = vmatprep.subr.mxu0 0.0
      %210 = vmatpush1.msra.mxu0 %v182
      %211 = vmatprep.subr.mxu0 0.0
      %212 = vmatpush1.msra.mxu0 %v183
      %213 = vmatprep.subr.mxu0 0.0
      %214 = vmatpush1.msra.mxu0 0.0
      %215 = vmatprep.subr.mxu0 0.0
      %216 = vmatpush1.msra.mxu0 0.0
      %217 = vmatprep.subr.mxu0 0.0
      %218 = vmatpush1.msra.mxu0 0.0
      %219 = vmatprep.subr.mxu0 0.0
      %220 = vmatpush1.msra.mxu0 0.0
      %221 = vmatprep.subr.mxu0 0.0
      %222 = vmatpush1.msra.mxu0 0.0
      %223 = vmatprep.subr.mxu0 0.0
      %224 = vmatpush1.msra.mxu0 0.0
      %225 = vmatprep.subr.mxu0 0.0
      %226 = vmatpush1.msra.mxu0 0.0
      %227 = vmatprep.subr.mxu0 0.0
      %228 = vmatpush1.msra.mxu0 0.0
      %229 = vmatprep.subr.mxu0 0.0
      %230 = vmatpush1.msra.mxu0 0.0
      %231 = vmatprep.subr.mxu0 0.0
      %232 = vmatpush1.msra.mxu0 0.0
      %233 = vmatprep.subr.mxu0 0.0
      %234 = vmatpush1.msra.mxu0 0.0
      %235 = vmatprep.subr.mxu0 0.0
      %236 = vmatpush1.msra.mxu0 0.0
      %237 = vmatprep.subr.mxu0 0.0
      %238 = vmatpush1.msra.mxu0 0.0
      %239 = vmatprep.subr.mxu0 0.0
      %240 = vmatpush1.msra.mxu0 0.0
      %241 = vmatprep.subr.mxu0 0.0
      %242 = vmatpush1.msra.mxu0 0.0
      %243 = vmatprep.subr.mxu0 0.0
      %244 = vmatpush1.msra.mxu0 0.0
      %245 = vmatprep.subr.mxu0 0.0
      %246 = vmatpush1.msra.mxu0 0.0
      %247 = vmatprep.subr.mxu0 0.0
      %248 = vmatpush1.msra.mxu0 0.0
      %249 = vmatprep.subr.mxu0 0.0
      %250 = vmatpush1.msra.mxu0 0.0
      %251 = vmatprep.subr.mxu0 0.0
      %252 = vmatpush1.msra.mxu0 0.0
      %253 = vmatprep.subr.mxu0 0.0
      %254 = vmatpush1.msra.mxu0 0.0
      %255 = vmatprep.subr.mxu0 0.0
      %256 = vmatpush1.msra.mxu0 0.0
      %257 = vmatprep.subr.mxu0 0.0
      %258 = vmatpush1.msra.mxu0 0.0
      %259 = vmatprep.subr.mxu0 0.0
      %260 = vmatpush1.msra.mxu0 0.0
      %261 = vmatprep.subr.mxu0 0.0
      %262 = vmatpush1.msra.mxu0 0.0
      %263 = vmatprep.subr.mxu0 0.0
      %264 = vmatpush1.msra.mxu0 0.0
      %265 = vmatprep.subr.mxu0 0.0
      %266 = vmatpush1.msra.mxu0 0.0
      %267 = vmatprep.subr.mxu0 0.0
      %268 = vmatpush1.msra.mxu0 0.0
      %269 = vmatprep.subr.mxu0 0.0
      %270 = vmatpush1.msra.mxu0 0.0
      %271 = vmatprep.subr.mxu0 0.0
      %272 = vmatpush1.msra.mxu0 0.0
      %273 = vmatprep.mubr.f32.mxu0 0.0
      %274 = vmatmul.mubr.f32.gmra.mrb[0].mxu0 %v186
      %v275 = vpop.f32.mrb[0].mxu0
      %v276 = vadd.f32 0.0, %v275
      %v277 = vpop.f32.mrb[0].mxu0
      %278 = vmatprep.mubr.f32.mxu0 0.0
      %279 = vmatmul.mubr.f32.gmra.mrb[0].mxu0 %v189
      %v280 = vpop.f32.mrb[0].mxu0
      %v281 = vadd.f32 0.0, %v280
      %v282 = vpop.f32.mrb[0].mxu0
      %283 = vmatprep.mubr.f32.mxu0 0.0
      %284 = vmatmul.mubr.f32.gmra.mrb[0].mxu0 %v192
      %v285 = vpop.f32.mrb[0].mxu0
      %v286 = vadd.f32 0.0, %v285
      %v287 = vpop.f32.mrb[0].mxu0
      %288 = vmatprep.mubr.f32.mxu0 0.0
      %289 = vmatmul.mubr.f32.gmra.mrb[0].mxu0 %v195
      %v290 = vpop.f32.mrb[0].mxu0
      %v291 = vadd.f32 0.0, %v290
      %v292 = vpop.f32.mrb[0].mxu0
      %293 = vmatprep.mubr.f32.mxu0 0.0
      %294 = vmatmul.mubr.f32.gmra.mrb[0].mxu0 %v198
      %v295 = vpop.f32.mrb[0].mxu0
      %v296 = vadd.f32 0.0, %v295
      %v297 = vpop.f32.mrb[0].mxu0
      %298 = vmatprep.mubr.f32.mxu0 0.0
      %299 = vmatmul.mubr.f32.gmra.mrb[0].mxu0 %v201
      %v300 = vpop.f32.mrb[0].mxu0
      %v301 = vadd.f32 0.0, %v300
      %v302 = vpop.f32.mrb[0].mxu0
      %303 = vmatprep.mubr.f32.mxu0 0.0
      %304 = vmatmul.mubr.f32.gmra.mrb[0].mxu0 %v204
      %v305 = vpop.f32.mrb[0].mxu0
      %v306 = vadd.f32 0.0, %v305
      %v307 = vpop.f32.mrb[0].mxu0
      %308 = vmatprep.mubr.f32.mxu0 0.0
      %309 = vmatmul.mubr.f32.gmra.mrb[0].mxu0 %v207
      %v310 = vpop.f32.mrb[0].mxu0
      %v311 = vadd.f32 0.0, %v310
      %v312 = vpop.f32.mrb[0].mxu0
      %313 = vdwg.mxu0
      %vm314 = vcmask 261120
      %315 = vst.msk [vmem:[#allocation2] sm:$0xff] %vm314, %v276
      %316 = vst.msk [vmem:[#allocation2 + $0x8] sm:$0xff] %vm314, %v281
      %319 = vrot.lane.b32.xlu0 %v286, 32
      %v320 = vpop.permute.xlu0 %319
      %321 = vrot.lane.b32.xlu0 %v291, 32
      %v322 = vpop.permute.xlu0 %321
      %vm325 = vcmask 523520
      %326 = vst.msk [vmem:[#allocation2] sm:$0xff] %vm325, %v320
      %327 = vst.msk [vmem:[#allocation2 + $0x8] sm:$0xff] %vm325, %v322
      %330 = vrot.lane.b32.xlu0 %v296, 64
      %v331 = vpop.permute.xlu0 %330
      %332 = vrot.lane.b32.xlu0 %v301, 64
      %v333 = vpop.permute.xlu0 %332
      %vm336 = vcmask 785920
      %337 = vst.msk [vmem:[#allocation2] sm:$0xff] %vm336, %v331
      %338 = vst.msk [vmem:[#allocation2 + $0x8] sm:$0xff] %vm336, %v333
      %341 = vrot.lane.b32.xlu0 %v306, 96
      %v342 = vpop.permute.xlu0 %341
      %343 = vrot.lane.b32.xlu0 %v311, 96
      %v344 = vpop.permute.xlu0 %343
      %vm347 = vcmask 1048320
      %348 = vst.msk [vmem:[#allocation2] sm:$0xff] %vm347, %v342
      %349 = vst.msk [vmem:[#allocation2 + $0x8] sm:$0xff] %vm347, %v344
      %v350 = vld [vmem:[#allocation2] sm:$0xff]
      %v351 = vld [vmem:[#allocation2 + $0x8] sm:$0xff]
      %v352 = vld [vmem:[%s0] sm:$0xff]
      %v353 = vld [vmem:[%s0 + $0x8] sm:$0xff]
      %v354 = vld [vmem:[%s0 + $0x10] sm:$0xff]
      %v355 = vld [vmem:[%s0 + $0x18] sm:$0xff]
      %v357 = vsel %vm184, %v352, 0
      %v360 = vsel %vm184, %v353, 0
      %v363 = vsel %vm184, %v354, 0
      %v366 = vsel %vm184, %v355, 0
      %368 = vmatprep.subr.mxu0 0.0
      %369 = vmatpush1.msra.mxu0 %v350
      %370 = vmatprep.subr.mxu0 0.0
      %371 = vmatpush1.msra.mxu0 %v351
      %372 = vmatprep.subr.mxu0 0.0
      %373 = vmatpush1.msra.mxu0 0.0
      %374 = vmatprep.subr.mxu0 0.0
      %375 = vmatpush1.msra.mxu0 0.0
      %376 = vmatprep.subr.mxu0 0.0
      %377 = vmatpush1.msra.mxu0 0.0
      %378 = vmatprep.subr.mxu0 0.0
      %379 = vmatpush1.msra.mxu0 0.0
      %380 = vmatprep.subr.mxu0 0.0
      %381 = vmatpush1.msra.mxu0 0.0
      %382 = vmatprep.subr.mxu0 0.0
      %383 = vmatpush1.msra.mxu0 0.0
      %384 = vmatprep.subr.mxu0 0.0
      %385 = vmatpush1.msra.mxu0 0.0
      %386 = vmatprep.subr.mxu0 0.0
      %387 = vmatpush1.msra.mxu0 0.0
      %388 = vmatprep.subr.mxu0 0.0
      %389 = vmatpush1.msra.mxu0 0.0
      %390 = vmatprep.subr.mxu0 0.0
      %391 = vmatpush1.msra.mxu0 0.0
      %392 = vmatprep.subr.mxu0 0.0
      %393 = vmatpush1.msra.mxu0 0.0
      %394 = vmatprep.subr.mxu0 0.0
      %395 = vmatpush1.msra.mxu0 0.0
      %396 = vmatprep.subr.mxu0 0.0
      %397 = vmatpush1.msra.mxu0 0.0
      %398 = vmatprep.subr.mxu0 0.0
      %399 = vmatpush1.msra.mxu0 0.0
      %400 = vmatprep.subr.mxu0 0.0
      %401 = vmatpush1.msra.mxu0 0.0
      %402 = vmatprep.subr.mxu0 0.0
      %403 = vmatpush1.msra.mxu0 0.0
      %404 = vmatprep.subr.mxu0 0.0
      %405 = vmatpush1.msra.mxu0 0.0
      %406 = vmatprep.subr.mxu0 0.0
      %407 = vmatpush1.msra.mxu0 0.0
      %408 = vmatprep.subr.mxu0 0.0
      %409 = vmatpush1.msra.mxu0 0.0
      %410 = vmatprep.subr.mxu0 0.0
      %411 = vmatpush1.msra.mxu0 0.0
      %412 = vmatprep.subr.mxu0 0.0
      %413 = vmatpush1.msra.mxu0 0.0
      %414 = vmatprep.subr.mxu0 0.0
      %415 = vmatpush1.msra.mxu0 0.0
      %416 = vmatprep.subr.mxu0 0.0
      %417 = vmatpush1.msra.mxu0 0.0
      %418 = vmatprep.subr.mxu0 0.0
      %419 = vmatpush1.msra.mxu0 0.0
      %420 = vmatprep.subr.mxu0 0.0
      %421 = vmatpush1.msra.mxu0 0.0
      %422 = vmatprep.subr.mxu0 0.0
      %423 = vmatpush1.msra.mxu0 0.0
      %424 = vmatprep.subr.mxu0 0.0
      %425 = vmatpush1.msra.mxu0 0.0
      %426 = vmatprep.subr.mxu0 0.0
      %427 = vmatpush1.msra.mxu0 0.0
      %428 = vmatprep.subr.mxu0 0.0
      %429 = vmatpush1.msra.mxu0 0.0
      %430 = vmatprep.subr.mxu0 0.0
      %431 = vmatpush1.msra.mxu0 0.0
      %432 = vmatprep.mubr.f32.mxu0 0.0
      %433 = vmatmul.mubr.f32.gmra.mrb[0].mxu0 %v357
      %v434 = vpop.f32.mrb[0].mxu0
      %v435 = vadd.f32 0.0, %v434
      %v436 = vpop.f32.mrb[0].mxu0
      %437 = vmatprep.mubr.f32.mxu0 0.0
      %438 = vmatmul.mubr.f32.gmra.mrb[0].mxu0 %v360
      %v439 = vpop.f32.mrb[0].mxu0
      %v440 = vadd.f32 0.0, %v439
      %v441 = vpop.f32.mrb[0].mxu0
      %442 = vmatprep.mubr.f32.mxu0 0.0
      %443 = vmatmul.mubr.f32.gmra.mrb[0].mxu0 %v363
      %v444 = vpop.f32.mrb[0].mxu0
      %v445 = vadd.f32 0.0, %v444
      %v446 = vpop.f32.mrb[0].mxu0
      %447 = vmatprep.mubr.f32.mxu0 0.0
      %448 = vmatmul.mubr.f32.gmra.mrb[0].mxu0 %v366
      %v449 = vpop.f32.mrb[0].mxu0
      %v450 = vadd.f32 0.0, %v449
      %v451 = vpop.f32.mrb[0].mxu0
      %452 = vdwg.mxu0
      %453 = vst.msk [vmem:[%s172] sm:$0xff] %vm314, %v435
      %454 = vst.msk [vmem:[%s172 + $0x8] sm:$0xff] %vm314, %v440
      %455 = vst.msk [vmem:[%s172 + $0x10] sm:$0xff] %vm314, %v445
      %456 = vst.msk [vmem:[%s172 + $0x18] sm:$0xff] %vm314, %v450
      %461 = vrot.lane.b32.xlu0 %v435, 96
      %v462 = vpop.permute.xlu0 %461
      %463 = vrot.lane.b32.xlu0 %v440, 96
      %v464 = vpop.permute.xlu0 %463
      %465 = vrot.lane.b32.xlu0 %v445, 96
      %v466 = vpop.permute.xlu0 %465
      %467 = vrot.lane.b32.xlu0 %v450, 96
      %v468 = vpop.permute.xlu0 %467
      %473 = vst.msk [vmem:[%s172 + $0x20] sm:$0xff] %vm314, %v462
      %474 = vst.msk [vmem:[%s172 + $0x28] sm:$0xff] %vm314, %v464
      %475 = vst.msk [vmem:[%s172 + $0x30] sm:$0xff] %vm314, %v466
      %476 = vst.msk [vmem:[%s172 + $0x38] sm:$0xff] %vm314, %v468
      %477 = vrot.lane.b32.xlu0 %v435, 64
      %v478 = vpop.permute.xlu0 %477
      %479 = vrot.lane.b32.xlu0 %v440, 64
      %v480 = vpop.permute.xlu0 %479
      %481 = vrot.lane.b32.xlu0 %v445, 64
      %v482 = vpop.permute.xlu0 %481
      %483 = vrot.lane.b32.xlu0 %v450, 64
      %v484 = vpop.permute.xlu0 %483
      %489 = vst.msk [vmem:[%s172 + $0x40] sm:$0xff] %vm314, %v478
      %490 = vst.msk [vmem:[%s172 + $0x48] sm:$0xff] %vm314, %v480
      %491 = vst.msk [vmem:[%s172 + $0x50] sm:$0xff] %vm314, %v482
      %492 = vst.msk [vmem:[%s172 + $0x58] sm:$0xff] %vm314, %v484
      %493 = vrot.lane.b32.xlu0 %v435, 32
      %v494 = vpop.permute.xlu0 %493
      %495 = vrot.lane.b32.xlu0 %v440, 32
      %v496 = vpop.permute.xlu0 %495
      %497 = vrot.lane.b32.xlu0 %v445, 32
      %v498 = vpop.permute.xlu0 %497
      %499 = vrot.lane.b32.xlu0 %v450, 32
      %v500 = vpop.permute.xlu0 %499
      %505 = vst.msk [vmem:[%s172 + $0x60] sm:$0xff] %vm314, %v494
      %506 = vst.msk [vmem:[%s172 + $0x68] sm:$0xff] %vm314, %v496
      %507 = vst.msk [vmem:[%s172 + $0x70] sm:$0xff] %vm314, %v498
      %508 = vst.msk [vmem:[%s172 + $0x78] sm:$0xff] %vm314, %v500
      %s509 = smul.u32 16, %s14
      %p510 = scmp.lt.s32.totalorder %s509, 31
      %s511 = scalar_select %p510, %s509, 31
      %s512 = smul.addr %s511, 8
      %s513 = scalar_lea.vmem %s3, %s512
      // Predicated region
      $region33: #{tpu_custom_call.1} parent=31 // pred_check
        %p514 = pneg %p100
      $region34: #{tpu_custom_call.1} parent=31 // pred_check_branch
        %516 = sbr.rel (%p514) target = $region36
      $region35: #{tpu_custom_call.1} parent=31 // pred_region
        %s517 = smul.u32 16, %s14
      $region36: #{tpu_custom_call.1} parent=31 // pred_fallthru
        _
    $region32: #{tpu_custom_call.1} parent=5 // pred_fallthru
      _
    %p518 = scmp.le.s32.totalorder 2, %s9
    // Predicated region
    $region37: #{tpu_custom_call.1} parent=5 // pred_check
      %p519 = pneg %p518
    $region38: #{tpu_custom_call.1} parent=5 // pred_check_branch
      %521 = sbr.rel (%p519) target = $region40
    $region39: #{tpu_custom_call.1} parent=5 // pred_region
      %s522 = ssub.s32 %s9, 2
      // Predicated region
      $region41: #{tpu_custom_call.1} parent=39 // pred_check
        %p523 = pneg %p106
      $region42: #{tpu_custom_call.1} parent=39 // pred_check_branch
        %525 = sbr.rel (%p523) target = $region44
      $region43: #{tpu_custom_call.1} parent=39 // pred_region
        %s526 = smul.u32 16, %s15
        %p527 = scmp.lt.s32.totalorder %s526, 31
        %s528 = scalar_select %p527, %s526, 31
        %s529 = smul.addr %s528, 8
        %s530 = scalar_lea.vmem %s3, %s529
      $region44: #{tpu_custom_call.1} parent=39 // pred_fallthru
        _
    $region40: #{tpu_custom_call.1} parent=5 // pred_fallthru
      _
  $region6: #{tpu_custom_call.1} parent=0 // loop_footer
    %s13 = sadd.s32 1, %s9
  $region7: #{tpu_custom_call.1} parent=0 // loop_footer_branch
    %8 = sbr.rel target = $region3
  $region8: #{tpu_custom_call.1} parent=0 // loop_exit
    _

</llo_original>
